<compile_context>
chip_gen: v6e
topology: v6e:2x2x1
jax: 0.10.0
libtpu: 0.0.40
codegen_flags: <defaults>
</compile_context>

<pallas_src>
import jax
import jax.numpy as jnp
from jax import lax
from jax.experimental import pallas as pl
from jax.experimental.pallas import tpu as pltpu


def nll_sequence_loss(x, length, target, weight):
    """x: (B, T, C) log-probs (f32 or bf16); length, target: (B,) int;
    weight: (C,) float. Returns scalar float32 loss (mean over batch of the
    weighted NLL at the last valid timestep of each sequence)."""
    B, T, C = x.shape

    len2 = length.astype(jnp.int32).reshape(B, 1)
    tgt2 = target.astype(jnp.int32).reshape(B, 1)
    w3 = weight.astype(jnp.float32).reshape(1, 1, C)

    # Rows per grid step: whole batch if it fits, otherwise ~4 MiB chunks
    # (x 2 double-buffering stays under every generation's scoped VMEM default).
    itemsize = jnp.dtype(x.dtype).itemsize
    bytes_per_row = max(1, T * C * itemsize)
    cap_rows = max(8, ((4 * 1024 * 1024) // bytes_per_row // 8) * 8)
    bb = B if B <= cap_rows else cap_rows
    nsteps = pl.cdiv(B, bb)
    needs_row_mask = (B % bb) != 0          # only the last chunk can be partial

    def kernel(x_ref, len_ref, tgt_ref, w_ref, out_ref):
        step = pl.program_id(0)

        x_blk = x_ref[...].astype(jnp.float32)        # (bb, T, C), cast after load
        w = w_ref[...].astype(jnp.float32)            # (1, 1, C), broadcasts
        lens = len_ref[...]                           # (bb, 1) int32
        tgts = tgt_ref[...]                           # (bb, 1) int32

        # PyTorch: L = min(T, length[b]); mask[b, L - 1] = 1 (negative index wraps).
        last = jnp.minimum(jnp.int32(T), lens) - 1
        last = jnp.where(last < 0, last + jnp.int32(T), last)   # (bb, 1)

        if needs_row_mask:
            # Disable out-of-range rows of a partial last chunk (t never matches -1).
            rows = step * bb + lax.broadcasted_iota(jnp.int32, (bb, 1), 0)
            last = jnp.where(rows < B, last, jnp.int32(-1))

        t_iota = lax.broadcasted_iota(jnp.int32, (bb, T, C), 1)
        c_iota = lax.broadcasted_iota(jnp.int32, (bb, T, C), 2)
        hit = (t_iota == last[:, :, None]) & (c_iota == tgts[:, :, None])

        # Select-before-sum: padded / out-of-range elements never enter the math.
        vals = jnp.where(hit, x_blk * w, jnp.float32(0.0))
        partial = -jnp.sum(vals)                      # one reduce per chunk
        out_ref[...] = jnp.broadcast_to(partial, (1, 1, 1))

    partials = pl.pallas_call(
        kernel,
        out_shape=jax.ShapeDtypeStruct((nsteps, 1, 1), jnp.float32),
        grid=(nsteps,),
        in_specs=[
            pl.BlockSpec((bb, T, C), lambda i: (i, 0, 0)),   # batch chunk, full T & C
            pl.BlockSpec((bb, 1), lambda i: (i, 0)),         # length chunk
            pl.BlockSpec((bb, 1), lambda i: (i, 0)),         # target chunk
            pl.BlockSpec((1, 1, C), lambda i: (0, 0, 0)),    # class weights (resident)
        ],
        out_specs=pl.BlockSpec((1, 1, 1), lambda i: (i, 0, 0)),  # per-chunk partial
        compiler_params=pltpu.CompilerParams(
            # Each step writes an independent partial -> parallel axis (v7x megacore).
            dimension_semantics=("parallel",),
        ),
    )(x, len2, tgt2, w3)

    # sum(mask) == B exactly (each row selects exactly one timestep).
    return jnp.sum(partials) * jnp.float32(1.0 / B)


if __name__ == "__main__":
    key = jax.random.PRNGKey(0)
    B, T, C = 2, 8, 2                                        # module has C=2 classes

    k_logits, k_tgt = jax.random.split(key)
    logits = jax.random.normal(k_logits, (B, T, C), dtype=jnp.float32)
    log_probs = jax.nn.log_softmax(logits, axis=-1)          # module expects log-probs
    target = jax.random.randint(k_tgt, (B,), 0, C, dtype=jnp.int32)
    length = jnp.array([5, 8], dtype=jnp.int32)
    weight = jnp.array([0.3, 0.7], dtype=jnp.float32)        # from module __init__

    out = jax.block_until_ready(nll_sequence_loss(log_probs, length, target, weight))

    # Pure-JAX reference for sanity check.
    sel_w = weight[target]                                                           # (B,)
    picked = jnp.take_along_axis(log_probs, target[:, None, None], axis=-1)[..., 0]  # (B, T)
    loss_ref = -sel_w[:, None] * picked
    last = jnp.minimum(T, length) - 1
    mask = (jnp.arange(T)[None, :] == last[:, None]).astype(jnp.float32)
    ref = (loss_ref * mask).sum() / mask.sum()

    assert jnp.allclose(out, ref, atol=1e-5, rtol=1e-5), (out, ref)
    print("KERNEL_OK")
</pallas_src>

<mosaic_0001>
module attributes {stable_mosaic.version = 11 : i64} {
  func.func @kernel(%arg0: i32, %arg1: memref<2x8x2xf32, #tpu.memory_space<vmem>>, %arg2: memref<2x1xi32, #tpu.memory_space<vmem>>, %arg3: memref<2x1xi32, #tpu.memory_space<vmem>>, %arg4: memref<1x1x2xf32, #tpu.memory_space<vmem>>, %arg5: memref<1x1x1xf32, #tpu.memory_space<vmem>>) attributes {dimension_semantics = [#tpu.dimension_semantics<parallel>], iteration_bounds = array<i64: 1>, scalar_prefetch = 0 : i64, scratch_operands = 0 : i64, tpu.core_type = #tpu.core_type<tc>, window_params = [{transform_indices = @transform_0, window_bounds = array<i64: 2, 8, 2>}, {transform_indices = @transform_1, window_bounds = array<i64: 2, 1>}, {transform_indices = @transform_2, window_bounds = array<i64: 2, 1>}, {pipeline_mode = #tpu.pipeline_mode<synchronous>, transform_indices = @transform_3, window_bounds = array<i64: 1, 1, 2>}, {transform_indices = @transform_4, window_bounds = array<i64: 1, 1, 1>}]} {
    %c0 = arith.constant 0 : index
    %c0_0 = arith.constant 0 : index
    %c0_1 = arith.constant 0 : index
    %0 = vector.load %arg1[%c0, %c0_0, %c0_1] : memref<2x8x2xf32, #tpu.memory_space<vmem>>, vector<2x8x2xf32>
    %c0_2 = arith.constant 0 : index
    %c0_3 = arith.constant 0 : index
    %c0_4 = arith.constant 0 : index
    %1 = vector.load %arg4[%c0_2, %c0_3, %c0_4] : memref<1x1x2xf32, #tpu.memory_space<vmem>>, vector<1x1x2xf32>
    %c0_5 = arith.constant 0 : index
    %c0_6 = arith.constant 0 : index
    %2 = vector.load %arg2[%c0_5, %c0_6] : memref<2x1xi32, #tpu.memory_space<vmem>>, vector<2x1xi32>
    %c0_7 = arith.constant 0 : index
    %c0_8 = arith.constant 0 : index
    %3 = vector.load %arg3[%c0_7, %c0_8] : memref<2x1xi32, #tpu.memory_space<vmem>>, vector<2x1xi32>
    %c8_i32 = arith.constant 8 : i32
    %4 = vector.broadcast %c8_i32 : i32 to vector<2x1xi32>
    %5 = arith.minsi %4, %2 : vector<2x1xi32>
    %c1_i32 = arith.constant 1 : i32
    %6 = vector.broadcast %c1_i32 : i32 to vector<2x1xi32>
    %7 = arith.subi %5, %6 : vector<2x1xi32>
    %c0_i32 = arith.constant 0 : i32
    %8 = vector.broadcast %c0_i32 : i32 to vector<2x1xi32>
    %9 = arith.cmpi slt, %7, %8 : vector<2x1xi32>
    %c8_i32_9 = arith.constant 8 : i32
    %10 = vector.broadcast %c8_i32_9 : i32 to vector<2x1xi32>
    %11 = arith.addi %7, %10 : vector<2x1xi32>
    %12 = arith.select %9, %11, %7 : vector<2x1xi1>, vector<2x1xi32>
    %13 = tpu.iota {dimensions = array<i32: 1>} : vector<2x8x2xi32>
    %14 = tpu.iota {dimensions = array<i32: 2>} : vector<2x8x2xi32>
    %15 = vector.shape_cast %12 : vector<2x1xi32> to vector<2x1x1xi32>
    %16 = vector.broadcast %15 : vector<2x1x1xi32> to vector<2x8x2xi32>
    %17 = arith.cmpi eq, %13, %16 : vector<2x8x2xi32>
    %18 = vector.shape_cast %3 : vector<2x1xi32> to vector<2x1x1xi32>
    %19 = vector.broadcast %18 : vector<2x1x1xi32> to vector<2x8x2xi32>
    %20 = arith.cmpi eq, %14, %19 : vector<2x8x2xi32>
    %21 = arith.andi %17, %20 : vector<2x8x2xi1>
    %22 = vector.broadcast %1 : vector<1x1x2xf32> to vector<2x8x2xf32>
    %23 = arith.mulf %0, %22 : vector<2x8x2xf32>
    %cst = arith.constant 0.000000e+00 : f32
    %24 = vector.broadcast %cst : f32 to vector<2x8x2xf32>
    %25 = arith.select %21, %23, %24 : vector<2x8x2xi1>, vector<2x8x2xf32>
    %26 = vector.shape_cast %25 : vector<2x8x2xf32> to vector<1x2x8x2xf32>
    %cst_10 = arith.constant dense<0.000000e+00> : vector<1xf32>
    %27 = vector.multi_reduction <add>, %26, %cst_10 [1, 2, 3] : vector<1x2x8x2xf32> to vector<1xf32>
    %28 = vector.shape_cast %27 : vector<1xf32> to vector<1x1x1x1xf32>
    %29 = vector.extract %28[0, 0, 0, 0] : f32 from vector<1x1x1x1xf32>
    %cst_11 = arith.constant 0.000000e+00 : f32
    %30 = arith.subf %cst_11, %29 : f32
    %31 = vector.broadcast %30 : f32 to vector<1x1x1xf32>
    %c0_12 = arith.constant 0 : index
    %c0_13 = arith.constant 0 : index
    %c0_14 = arith.constant 0 : index
    %32 = vector.load %arg5[%c0_12, %c0_13, %c0_14] : memref<1x1x1xf32, #tpu.memory_space<vmem>>, vector<1x1x1xf32>
    tpu.vector_store %arg5[%c0_12, %c0_13, %c0_14], %31 {strides = array<i32>} : memref<1x1x1xf32, #tpu.memory_space<vmem>>, vector<1x1x1xf32>,
    return
  }
  func.func @transform_0(%arg0: i32) -> (i32, i32, i32) {
    %c0_i32 = arith.constant 0 : i32
    %c0_i32_0 = arith.constant 0 : i32
    %c0_i32_1 = arith.constant 0 : i32
    return %arg0, %c0_i32, %c0_i32_0 : i32, i32, i32
  }
  func.func @transform_1(%arg0: i32) -> (i32, i32) {
    %c0_i32 = arith.constant 0 : i32
    %c0_i32_0 = arith.constant 0 : i32
    return %arg0, %c0_i32 : i32, i32
  }
  func.func @transform_2(%arg0: i32) -> (i32, i32) {
    %c0_i32 = arith.constant 0 : i32
    %c0_i32_0 = arith.constant 0 : i32
    return %arg0, %c0_i32 : i32, i32
  }
  func.func @transform_3(%arg0: i32) -> (i32, i32, i32) {
    %c0_i32 = arith.constant 0 : i32
    %c0_i32_0 = arith.constant 0 : i32
    %c0_i32_1 = arith.constant 0 : i32
    %c0_i32_2 = arith.constant 0 : i32
    return %c0_i32, %c0_i32_0, %c0_i32_1 : i32, i32, i32
  }
  func.func @transform_4(%arg0: i32) -> (i32, i32, i32) {
    %c0_i32 = arith.constant 0 : i32
    %c0_i32_0 = arith.constant 0 : i32
    %c0_i32_1 = arith.constant 0 : i32
    return %arg0, %c0_i32, %c0_i32_0 : i32, i32, i32
  }
}

</mosaic_0001>

<llo_original>
// kernel: tpu_custom_call.1
$region0: #{tpu_custom_call.1}
  #allocation0 [shape = 'u32[]', space=smem, size = 0x4, offset = 0x4, fixed_abs, tag = 'smem constant byte address 0x4 - core index']
  #allocation1 [shape = 'u32[144,128]{1,0:T(1,128)}', space=vmem, size = 0x12000, scoped, tag = 'internal scratch']
  %s0 = inlined_call_operand.vmem [shape: f32[2,8,2], index: 0, kind: input, shape index: {}]
  %s1 = inlined_call_operand.vmem [shape: s32[2,1], index: 1, kind: input, shape index: {}]
  %s2 = inlined_call_operand.vmem [shape: s32[2,1], index: 2, kind: input, shape index: {}]
  %s3 = inlined_call_operand.vmem [shape: f32[1,1,2], index: 3, kind: input, shape index: {}]
  %s4 = inlined_call_operand.hbm [shape: f32[1,1,1], index: 4, kind: output, shape index: {}]
  %s5 = sld [smem:[#allocation0]]
  $region26: #{tpu_custom_call.1} parent=0
    _
  %s7 = ssub.s32 1, %s5
  %s8 = scalar_select 0, %s7, %s5
  $region1: #{tpu_custom_call.1} parent=0
    #allocation2 [shape = 'u8[512]{0}', space=vmem, size = 0x400, scoped, tag = 'output window, operand 0, single buffered']
    #allocation3 [shape = 's32[1]{0}', space=sflag, size = 0x4, scoped, tag = 'scoped memory for tpu_custom_call.1']
    %9 = vsyncpa [#allocation3], 0
    // Predicated region
    $region2: #{tpu_custom_call.1} parent=1 // pred_check
      _
    $region3: #{tpu_custom_call.1} parent=1 // pred_check_branch
      %11 = sbr.rel (0) target = $region5
    $region4: #{tpu_custom_call.1} parent=1 // pred_region
      _
    $region5: #{tpu_custom_call.1} parent=1 // pred_fallthru
      _
    // Predicated region
    $region6: #{tpu_custom_call.1} parent=1 // pred_check
      _
    $region7: #{tpu_custom_call.1} parent=1 // pred_check_branch
      %13 = sbr.rel (0) target = $region9
    $region8: #{tpu_custom_call.1} parent=1 // pred_region
      _
    $region9: #{tpu_custom_call.1} parent=1 // pred_fallthru
      _
    // Predicated region
    $region10: #{tpu_custom_call.1} parent=1 // pred_check
      _
    $region11: #{tpu_custom_call.1} parent=1 // pred_check_branch
      %15 = sbr.rel (0) target = $region13
    $region12: #{tpu_custom_call.1} parent=1 // pred_region
      _
    $region13: #{tpu_custom_call.1} parent=1 // pred_fallthru
      _
    // Predicated region
    $region14: #{tpu_custom_call.1} parent=1 // pred_check
      _
    $region15: #{tpu_custom_call.1} parent=1 // pred_check_branch
      %17 = sbr.rel (0) target = $region17
    $region16: #{tpu_custom_call.1} parent=1 // pred_region
      _
    $region17: #{tpu_custom_call.1} parent=1 // pred_fallthru
      _
    %v18 = vld [vmem:[%s0] sm:$0xff]
    %v19 = vld [vmem:[%s0 + $0x8] sm:$0xff]
    %v20 = vld [vmem:[%s3] sm:$0x1]
    %v21 = vld [vmem:[%s1] sm:$0x3]
    %v22 = vld [vmem:[%s2] sm:$0x3]
    %vm23 = vcmp.lt.s32.totalorder %v21, 8
    %v24 = vsel %vm23, %v21, 8
    %v25 = vsub.s32 %v24, 1
    %vm26 = vcmp.lt.s32.totalorder %v25, 0
    %v27 = vadd.s32 %v25, 8
    %v28 = vsel %vm26, %v27, %v25
    %v29 = vlaneseq
    %v30 = vshrl.u32 %v29, 7
    %v31 = vlaneseq
    %v32 = vand.u32 %v31, 127
    %v34 = vunpack.c.l.s4 1966171168
    %v35 = vunpack.c.0.s8 %v34
    %v36 = vlaneseq
    %v37 = vshrl.u32 %v36, 7
    %v38 = vsub.s32 %v35, %v37
    %v39 = vrot.slane %v28, %v38
    %v40 = vcombine.high %v39, %v39
    %v42 = vunpack.c.l.s4 1966171168
    %v43 = vunpack.c.0.s8 %v42
    %v44 = vlaneseq
    %v45 = vshrl.u32 %v44, 7
    %v46 = vsub.s32 %v43, %v45
    %v47 = vrot.slane %v39, %v46
    %v49 = vunpack.c.l.s4 1966171168
    %v50 = vunpack.c.0.s8 %v49
    %v51 = vlaneseq
    %v52 = vshrl.u32 %v51, 7
    %v53 = vsub.s32 %v50, %v52
    %v54 = vrot.slane %v40, %v53
    %v55 = vlaneseq
    %v56 = vshrl.u32 %v55, 7
    %v57 = vsub.s32 0, %v56
    %v58 = vrot.slane %v47, %v57
    %v59 = vlaneseq
    %v60 = vshrl.u32 %v59, 7
    %v61 = vsub.s32 0, %v60
    %v62 = vrot.slane %v54, %v61
    %63 = vset.pattern.permute.xlu0 0
    %64 = vperm.xlu0 %63, %v58
    %v65 = vpop.permute.xlu0 %64
    %66 = vset.pattern.permute.xlu0 0
    %67 = vperm.xlu0 %66, %v62
    %v68 = vpop.permute.xlu0 %67
    %vm69 = vcmp.eq.s32.totalorder %v30, %v65
    %vm70 = vcmp.eq.s32.totalorder %v30, %v68
    %v72 = vunpack.c.l.s4 1966171168
    %v73 = vunpack.c.0.s8 %v72
    %v74 = vlaneseq
    %v75 = vshrl.u32 %v74, 7
    %v76 = vsub.s32 %v73, %v75
    %v77 = vrot.slane %v22, %v76
    %v78 = vcombine.high %v77, %v77
    %v80 = vunpack.c.l.s4 1966171168
    %v81 = vunpack.c.0.s8 %v80
    %v82 = vlaneseq
    %v83 = vshrl.u32 %v82, 7
    %v84 = vsub.s32 %v81, %v83
    %v85 = vrot.slane %v77, %v84
    %v87 = vunpack.c.l.s4 1966171168
    %v88 = vunpack.c.0.s8 %v87
    %v89 = vlaneseq
    %v90 = vshrl.u32 %v89, 7
    %v91 = vsub.s32 %v88, %v90
    %v92 = vrot.slane %v78, %v91
    %v93 = vlaneseq
    %v94 = vshrl.u32 %v93, 7
    %v95 = vsub.s32 0, %v94
    %v96 = vrot.slane %v85, %v95
    %v97 = vlaneseq
    %v98 = vshrl.u32 %v97, 7
    %v99 = vsub.s32 0, %v98
    %v100 = vrot.slane %v92, %v99
    %101 = vset.pattern.permute.xlu0 0
    %102 = vperm.xlu0 %101, %v96
    %v103 = vpop.permute.xlu0 %102
    %104 = vset.pattern.permute.xlu0 0
    %105 = vperm.xlu0 %104, %v100
    %v106 = vpop.permute.xlu0 %105
    %vm107 = vcmp.eq.s32.totalorder %v32, %v103
    %vm108 = vcmp.eq.s32.totalorder %v32, %v106
    %vm109 = vmand %vm69, %vm107
    %vm110 = vmand %vm70, %vm108
    %v112 = vlaneseq
    %v113 = vshrl.u32 %v112, 7
    %v114 = vsub.s32 0, %v113
    %v115 = vrot.slane %v20, %v114
    %v117 = vmul.f32 %v18, %v115
    %v118 = vmul.f32 %v19, %v115
    %v119 = vsel %vm109, %v117, 0.0
    %v120 = vsel %vm110, %v118, 0.0
    %vm121 = vcmask 15360
    %v122 = vsel %vm121, %v119, 0.0
    %v123 = vsel %vm121, %v120, 0.0
    %v124 = vadd.f32 %v122, %v123
    %125 = vadd.xlane.f32.xlu0 %v124
    %v126 = vpop.xlane.xlu0 %125
    %v127 = vrot.slane %v126, 4
    %v128 = vadd.f32 %v126, %v127
    %v129 = vrot.slane %v128, 2
    %v130 = vadd.f32 %v128, %v129
    %v131 = vrot.slane %v130, 1
    %v132 = vadd.f32 %v130, %v131
    %s133 = vtos %v132
    %s134 = ssub.f32 0.0, %s133
    %v135 = vstv %s134
    %vm136 = vcmask 0
    %137 = vst.msk [vmem:[#allocation2] sm:$0x1] %vm136, %v135
    // Predicated region
    $region18: #{tpu_custom_call.1} parent=1 // pred_check
      _
    $region19: #{tpu_custom_call.1} parent=1 // pred_check_branch
      %139 = sbr.rel (0) target = $region21
    $region20: #{tpu_custom_call.1} parent=1 // pred_region
      %s141 = ssub.s32 16, 16
      %142 = vsyncadd [#allocation3], %s141
      %s144 = sshll.u32 [#allocation2], 4
      %s145 = int_to_ptr.vmem [resolvable:$true] %s144
      %147 = dma.vmem_to_hbm [thread:$0]  %s145, 16, %s4, [#allocation3]
    $region21: #{tpu_custom_call.1} parent=1 // pred_fallthru
      _
    // Predicated region
    $region22: #{tpu_custom_call.1} parent=1 // pred_check
      _
    $region23: #{tpu_custom_call.1} parent=1 // pred_check_branch
      %149 = sbr.rel (0) target = $region25
    $region24: #{tpu_custom_call.1} parent=1 // pred_region
      %150 = dma.done [#allocation3], 16
    $region25: #{tpu_custom_call.1} parent=1 // pred_fallthru
      _
    %151 = vsyncpa [#allocation3], 1

</llo_original>
